<compile_context>
chip_gen: v7x
topology: tpu7x:2x2x1
jax: 0.10.0
libtpu: 0.0.40
codegen_flags: <defaults>
</compile_context>

<pallas_src>
import jax
import jax.numpy as jnp
from jax.experimental import pallas as pl
from jax.experimental.pallas import tpu as pltpu

OUT_PAD = 128  # lane width of the padded final weight, so the last matmul is a
               # textbook (tile_b, 64) x (64, 128) MXU shape; only column 0 is real.


def _round_up(n, m):
    return ((n + m - 1) // m) * m


def _cdiv(a, b):
    return -(-a // b)


def mlp_kernel(x_ref, w1_ref, b1_ref, w2_ref, b2_ref, w3_ref, b3_ref,
               w4_ref, b4_ref, o_ref):
    cd = w1_ref.dtype  # MXU operand dtype (f32 or bf16); accumulation is always f32.

    # hidden1 + ReLU (x streamed as f32; cast to the MXU dtype on the VPU in-kernel)
    h = jnp.dot(x_ref[...].astype(cd), w1_ref[...],
                preferred_element_type=jnp.float32)
    h = jnp.maximum(h + b1_ref[...], 0.0)
    # hidden2 + ReLU
    h = jnp.dot(h.astype(cd), w2_ref[...], preferred_element_type=jnp.float32)
    h = jnp.maximum(h + b2_ref[...], 0.0)
    # hidden3 + ReLU
    h = jnp.dot(h.astype(cd), w3_ref[...], preferred_element_type=jnp.float32)
    h = jnp.maximum(h + b3_ref[...], 0.0)

    # output layer: MXU matmul against the lane-padded (64, 128) weight, then keep
    # ONLY the single real logit column before the sigmoid epilogue.
    # (A further optimization would reshape this column to a lane-dense
    #  (tile_b//128, 128) tile before the exp; the (tile_b, 1) form is kept here
    #  because it already minimizes HBM writeback and lowers unconditionally.)
    logits = jnp.dot(h.astype(cd), w4_ref[...], preferred_element_type=jnp.float32)
    col = logits[:, :1] + b4_ref[:, :1]                    # (tile_b, 1) f32

    # numerically stable sigmoid: one EUP exp + one EUP approx reciprocal
    # (refined with a single Newton step to full f32 accuracy) instead of divisions.
    z = jnp.exp(-jnp.abs(col))                             # EUP; argument <= 0
    d = 1.0 + z
    inv = pl.reciprocal(d, approx=True)
    inv = inv * (2.0 - d * inv)                            # Newton step: ~f32 exact 1/d
    o_ref[...] = jnp.where(col >= 0.0, inv, z * inv)


def mlp_forward(x, params, *, tile_b=1024, compute_dtype=jnp.bfloat16):
    """x: (B, D) float32. params: dict of (in, out) weights and (1, out) biases."""
    B, D = x.shape
    f32 = jnp.float32

    # Lane-pad only the tiny 1-wide output layer (one-time cost; x is NOT padded).
    w4 = jnp.pad(params["w4"].astype(f32),
                 ((0, 0), (0, OUT_PAD - params["w4"].shape[1])))
    b4 = jnp.pad(params["b4"].astype(f32),
                 ((0, 0), (0, OUT_PAD - params["b4"].shape[1])))

    # Batch tiling: large tiles amortize per-grid-step overhead, but keep >= 2 grid
    # steps whenever the batch allows so v7x's two TensorCores both get work.
    tile_b = max(8, min(tile_b, _round_up(B, 8)))
    n_tiles = _cdiv(_round_up(B, 8), tile_b)
    if n_tiles < 2 and B >= 16:
        n_tiles = 2
    tile_b = _round_up(_cdiv(B, n_tiles), 8)
    B_pad = n_tiles * tile_b
    if B_pad != B:
        x = jnp.pad(x, ((0, B_pad - B), (0, 0)))

    # Weights (MXU operands) may be bf16; biases stay f32 (f32 VPU/EUP epilogue).
    cast = lambda w: w.astype(compute_dtype)
    weights = (cast(params["w1"]), params["b1"].astype(f32),
               cast(params["w2"]), params["b2"].astype(f32),
               cast(params["w3"]), params["b3"].astype(f32),
               cast(w4), b4)

    # Constant index_map -> weights/biases stay resident in VMEM across the grid.
    resident = lambda a: pl.BlockSpec(a.shape, lambda i: (0, 0))

    out = pl.pallas_call(
        mlp_kernel,
        out_shape=jax.ShapeDtypeStruct((B_pad, 1), jnp.float32),
        grid=(n_tiles,),
        in_specs=[pl.BlockSpec((tile_b, D), lambda i: (i, 0))]
                 + [resident(w) for w in weights],
        out_specs=pl.BlockSpec((tile_b, 1), lambda i: (i, 0)),
        compiler_params=pltpu.CompilerParams(
            dimension_semantics=("parallel",)),
    )(x, *weights)

    return out[:B]


def init_params(key, in_dim):
    """Deterministic init mirroring the nn.Linear shapes of the torch module."""
    dims = [(in_dim, 256), (256, 128), (128, 64), (64, 1)]
    params = {}
    for i, (din, dout) in enumerate(dims, start=1):
        key, kw, kb = jax.random.split(key, 3)
        bound = 1.0 / jnp.sqrt(din)
        params[f"w{i}"] = jax.random.uniform(
            kw, (din, dout), jnp.float32, -bound, bound)
        params[f"b{i}"] = jax.random.uniform(
            kb, (1, dout), jnp.float32, -bound, bound)
    return params


def mlp_reference(x, p):
    h = jnp.maximum(x @ p["w1"] + p["b1"], 0.0)
    h = jnp.maximum(h @ p["w2"] + p["b2"], 0.0)
    h = jnp.maximum(h @ p["w3"] + p["b3"], 0.0)
    return jax.nn.sigmoid(h @ p["w4"] + p["b4"])


if __name__ == "__main__":
    key = jax.random.PRNGKey(0)
    k_x, k_p, k_x2, k_x3 = jax.random.split(key, 4)

    D = 32  # stand-in for X_combined.shape[1]
    params = init_params(k_p, D)

    # 1) small batch, f32 MXU operands: exact semantics of the torch module
    x_small = jax.random.normal(k_x, (8, D), jnp.float32)
    out = mlp_forward(x_small, params, compute_dtype=jnp.float32)
    jax.block_until_ready(out)
    ref = mlp_reference(x_small, params)
    assert out.shape == (8, 1)
    assert jnp.allclose(out, ref, atol=1e-5, rtol=1e-5)

    # 2) non-multiple batch: exercises row padding + the 2-tile parallel grid
    x_big = jax.random.normal(k_x2, (1000, D), jnp.float32)
    out_big = mlp_forward(x_big, params, compute_dtype=jnp.float32)
    jax.block_until_ready(out_big)
    ref_big = mlp_reference(x_big, params)
    assert out_big.shape == (1000, 1)
    assert jnp.allclose(out_big, ref_big, atol=1e-5, rtol=1e-5)

    # 3) default path: bf16 MXU operands (weights), f32 x stream + f32 accumulation
    x_bf = jax.random.normal(k_x3, (512, D), jnp.float32)
    out_bf = mlp_forward(x_bf, params)
    jax.block_until_ready(out_bf)
    ref_bf = mlp_reference(x_bf, params)
    assert float(jnp.max(jnp.abs(out_bf - ref_bf))) < 3e-2

    print("KERNEL_OK")
</pallas_src>

<mosaic_0001>
module attributes {stable_mosaic.version = 11 : i64} {
  func.func @mlp_kernel(%arg0: i32, %arg1: memref<8x32xf32, #tpu.memory_space<vmem>>, %arg2: memref<32x256xf32, #tpu.memory_space<vmem>>, %arg3: memref<1x256xf32, #tpu.memory_space<vmem>>, %arg4: memref<256x128xf32, #tpu.memory_space<vmem>>, %arg5: memref<1x128xf32, #tpu.memory_space<vmem>>, %arg6: memref<128x64xf32, #tpu.memory_space<vmem>>, %arg7: memref<1x64xf32, #tpu.memory_space<vmem>>, %arg8: memref<64x128xf32, #tpu.memory_space<vmem>>, %arg9: memref<1x128xf32, #tpu.memory_space<vmem>>, %arg10: memref<8x1xf32, #tpu.memory_space<vmem>>) attributes {dimension_semantics = [#tpu.dimension_semantics<parallel>], iteration_bounds = array<i64: 1>, scalar_prefetch = 0 : i64, scratch_operands = 0 : i64, tpu.core_type = #tpu.core_type<tc>, window_params = [{transform_indices = @transform_0, window_bounds = array<i64: 8, 32>}, {pipeline_mode = #tpu.pipeline_mode<synchronous>, transform_indices = @transform_1, window_bounds = array<i64: 32, 256>}, {pipeline_mode = #tpu.pipeline_mode<synchronous>, transform_indices = @transform_2, window_bounds = array<i64: 1, 256>}, {pipeline_mode = #tpu.pipeline_mode<synchronous>, transform_indices = @transform_3, window_bounds = array<i64: 256, 128>}, {pipeline_mode = #tpu.pipeline_mode<synchronous>, transform_indices = @transform_4, window_bounds = array<i64: 1, 128>}, {pipeline_mode = #tpu.pipeline_mode<synchronous>, transform_indices = @transform_5, window_bounds = array<i64: 128, 64>}, {pipeline_mode = #tpu.pipeline_mode<synchronous>, transform_indices = @transform_6, window_bounds = array<i64: 1, 64>}, {pipeline_mode = #tpu.pipeline_mode<synchronous>, transform_indices = @transform_7, window_bounds = array<i64: 64, 128>}, {pipeline_mode = #tpu.pipeline_mode<synchronous>, transform_indices = @transform_8, window_bounds = array<i64: 1, 128>}, {transform_indices = @transform_9, window_bounds = array<i64: 8, 1>}]} {
    %c0 = arith.constant 0 : index
    %c0_0 = arith.constant 0 : index
    %0 = vector.load %arg1[%c0, %c0_0] : memref<8x32xf32, #tpu.memory_space<vmem>>, vector<8x32xf32>
    %c0_1 = arith.constant 0 : index
    %c0_2 = arith.constant 0 : index
    %1 = vector.load %arg2[%c0_1, %c0_2] : memref<32x256xf32, #tpu.memory_space<vmem>>, vector<32x256xf32>
    %cst = arith.constant dense<0.000000e+00> : vector<8x256xf32>
    %2 = tpu.matmul %0, %1, %cst {dimension_numbers = #tpu.dot_dimension_numbers<[1], [0], [0], [1], [0, 0, 1, 1], [], []>} : vector<8x32xf32>, vector<32x256xf32>, vector<8x256xf32> -> vector<8x256xf32>
    %c0_3 = arith.constant 0 : index
    %c0_4 = arith.constant 0 : index
    %3 = vector.load %arg3[%c0_3, %c0_4] : memref<1x256xf32, #tpu.memory_space<vmem>>, vector<1x256xf32>
    %4 = vector.broadcast %3 : vector<1x256xf32> to vector<8x256xf32>
    %5 = arith.addf %2, %4 : vector<8x256xf32>
    %cst_5 = arith.constant 0.000000e+00 : f32
    %6 = vector.broadcast %cst_5 : f32 to vector<8x256xf32>
    %7 = arith.maximumf %5, %6 : vector<8x256xf32>
    %c0_6 = arith.constant 0 : index
    %c0_7 = arith.constant 0 : index
    %8 = vector.load %arg4[%c0_6, %c0_7] : memref<256x128xf32, #tpu.memory_space<vmem>>, vector<256x128xf32>
    %cst_8 = arith.constant dense<0.000000e+00> : vector<8x128xf32>
    %9 = tpu.matmul %7, %8, %cst_8 {dimension_numbers = #tpu.dot_dimension_numbers<[1], [0], [0], [1], [0, 0, 1, 1], [], []>} : vector<8x256xf32>, vector<256x128xf32>, vector<8x128xf32> -> vector<8x128xf32>
    %c0_9 = arith.constant 0 : index
    %c0_10 = arith.constant 0 : index
    %10 = vector.load %arg5[%c0_9, %c0_10] : memref<1x128xf32, #tpu.memory_space<vmem>>, vector<1x128xf32>
    %11 = vector.broadcast %10 : vector<1x128xf32> to vector<8x128xf32>
    %12 = arith.addf %9, %11 : vector<8x128xf32>
    %cst_11 = arith.constant 0.000000e+00 : f32
    %13 = vector.broadcast %cst_11 : f32 to vector<8x128xf32>
    %14 = arith.maximumf %12, %13 : vector<8x128xf32>
    %c0_12 = arith.constant 0 : index
    %c0_13 = arith.constant 0 : index
    %15 = vector.load %arg6[%c0_12, %c0_13] : memref<128x64xf32, #tpu.memory_space<vmem>>, vector<128x64xf32>
    %cst_14 = arith.constant dense<0.000000e+00> : vector<8x64xf32>
    %16 = tpu.matmul %14, %15, %cst_14 {dimension_numbers = #tpu.dot_dimension_numbers<[1], [0], [0], [1], [0, 0, 1, 1], [], []>} : vector<8x128xf32>, vector<128x64xf32>, vector<8x64xf32> -> vector<8x64xf32>
    %c0_15 = arith.constant 0 : index
    %c0_16 = arith.constant 0 : index
    %17 = vector.load %arg7[%c0_15, %c0_16] : memref<1x64xf32, #tpu.memory_space<vmem>>, vector<1x64xf32>
    %18 = vector.broadcast %17 : vector<1x64xf32> to vector<8x64xf32>
    %19 = arith.addf %16, %18 : vector<8x64xf32>
    %cst_17 = arith.constant 0.000000e+00 : f32
    %20 = vector.broadcast %cst_17 : f32 to vector<8x64xf32>
    %21 = arith.maximumf %19, %20 : vector<8x64xf32>
    %c0_18 = arith.constant 0 : index
    %c0_19 = arith.constant 0 : index
    %22 = vector.load %arg8[%c0_18, %c0_19] : memref<64x128xf32, #tpu.memory_space<vmem>>, vector<64x128xf32>
    %cst_20 = arith.constant dense<0.000000e+00> : vector<8x128xf32>
    %23 = tpu.matmul %21, %22, %cst_20 {dimension_numbers = #tpu.dot_dimension_numbers<[1], [0], [0], [1], [0, 0, 1, 1], [], []>} : vector<8x64xf32>, vector<64x128xf32>, vector<8x128xf32> -> vector<8x128xf32>
    %24 = vector.extract_strided_slice %23 {offsets = [0, 0], sizes = [8, 1], strides = [1, 1]} : vector<8x128xf32> to vector<8x1xf32>
    %c0_21 = arith.constant 0 : index
    %c0_22 = arith.constant 0 : index
    %25 = vector.load %arg9[%c0_21, %c0_22] : memref<1x128xf32, #tpu.memory_space<vmem>>, vector<1x1xf32>
    %26 = vector.broadcast %25 : vector<1x1xf32> to vector<8x1xf32>
    %27 = arith.addf %24, %26 : vector<8x1xf32>
    %28 = math.absf %27 : vector<8x1xf32>
    %cst_23 = arith.constant 0.000000e+00 : f32
    %29 = vector.broadcast %cst_23 : f32 to vector<8x1xf32>
    %30 = arith.subf %29, %28 : vector<8x1xf32>
    %31 = math.exp %30 : vector<8x1xf32>
    %cst_24 = arith.constant 1.000000e+00 : f32
    %32 = vector.broadcast %cst_24 : f32 to vector<8x1xf32>
    %33 = arith.addf %32, %31 : vector<8x1xf32>
    %34 = tpu.reciprocal %33 {approx = true} : vector<8x1xf32> -> vector<8x1xf32>
    %35 = arith.mulf %33, %34 : vector<8x1xf32>
    %cst_25 = arith.constant 2.000000e+00 : f32
    %36 = vector.broadcast %cst_25 : f32 to vector<8x1xf32>
    %37 = arith.subf %36, %35 : vector<8x1xf32>
    %38 = arith.mulf %34, %37 : vector<8x1xf32>
    %cst_26 = arith.constant 0.000000e+00 : f32
    %39 = vector.broadcast %cst_26 : f32 to vector<8x1xf32>
    %40 = arith.cmpf oge, %27, %39 : vector<8x1xf32>
    %41 = arith.mulf %31, %38 : vector<8x1xf32>
    %42 = arith.select %40, %38, %41 : vector<8x1xi1>, vector<8x1xf32>
    %c0_27 = arith.constant 0 : index
    %c0_28 = arith.constant 0 : index
    %43 = vector.load %arg10[%c0_27, %c0_28] : memref<8x1xf32, #tpu.memory_space<vmem>>, vector<8x1xf32>
    tpu.vector_store %arg10[%c0_27, %c0_28], %42 {strides = array<i32>} : memref<8x1xf32, #tpu.memory_space<vmem>>, vector<8x1xf32>,
    return
  }
  func.func @transform_0(%arg0: i32) -> (i32, i32) {
    %c0_i32 = arith.constant 0 : i32
    %c0_i32_0 = arith.constant 0 : i32
    return %arg0, %c0_i32 : i32, i32
  }
  func.func @transform_1(%arg0: i32) -> (i32, i32) {
    %c0_i32 = arith.constant 0 : i32
    %c0_i32_0 = arith.constant 0 : i32
    %c0_i32_1 = arith.constant 0 : i32
    return %c0_i32, %c0_i32_0 : i32, i32
  }
  func.func @transform_2(%arg0: i32) -> (i32, i32) {
    %c0_i32 = arith.constant 0 : i32
    %c0_i32_0 = arith.constant 0 : i32
    %c0_i32_1 = arith.constant 0 : i32
    return %c0_i32, %c0_i32_0 : i32, i32
  }
  func.func @transform_3(%arg0: i32) -> (i32, i32) {
    %c0_i32 = arith.constant 0 : i32
    %c0_i32_0 = arith.constant 0 : i32
    %c0_i32_1 = arith.constant 0 : i32
    return %c0_i32, %c0_i32_0 : i32, i32
  }
  func.func @transform_4(%arg0: i32) -> (i32, i32) {
    %c0_i32 = arith.constant 0 : i32
    %c0_i32_0 = arith.constant 0 : i32
    %c0_i32_1 = arith.constant 0 : i32
    return %c0_i32, %c0_i32_0 : i32, i32
  }
  func.func @transform_5(%arg0: i32) -> (i32, i32) {
    %c0_i32 = arith.constant 0 : i32
    %c0_i32_0 = arith.constant 0 : i32
    %c0_i32_1 = arith.constant 0 : i32
    return %c0_i32, %c0_i32_0 : i32, i32
  }
  func.func @transform_6(%arg0: i32) -> (i32, i32) {
    %c0_i32 = arith.constant 0 : i32
    %c0_i32_0 = arith.constant 0 : i32
    %c0_i32_1 = arith.constant 0 : i32
    return %c0_i32, %c0_i32_0 : i32, i32
  }
  func.func @transform_7(%arg0: i32) -> (i32, i32) {
    %c0_i32 = arith.constant 0 : i32
    %c0_i32_0 = arith.constant 0 : i32
    %c0_i32_1 = arith.constant 0 : i32
    return %c0_i32, %c0_i32_0 : i32, i32
  }
  func.func @transform_8(%arg0: i32) -> (i32, i32) {
    %c0_i32 = arith.constant 0 : i32
    %c0_i32_0 = arith.constant 0 : i32
    %c0_i32_1 = arith.constant 0 : i32
    return %c0_i32, %c0_i32_0 : i32, i32
  }
  func.func @transform_9(%arg0: i32) -> (i32, i32) {
    %c0_i32 = arith.constant 0 : i32
    %c0_i32_0 = arith.constant 0 : i32
    return %arg0, %c0_i32 : i32, i32
  }
}

</mosaic_0001>

<llo_original>
// kernel: tpu_custom_call.1
$region0: #{tpu_custom_call.1}
  #allocation0 [shape = 'u32[]', space=smem, size = 0x4, offset = 0x4, fixed_abs, tag = 'smem constant byte address 0x4 - core index']
  #allocation1 [shape = 'u32[144,128]{1,0:T(1,128)}', space=vmem, size = 0x12000, scoped, tag = 'internal scratch']
  %s0 = inlined_call_operand.vmem [shape: f32[8,32], index: 0, kind: input, shape index: {}]
  %s1 = inlined_call_operand.vmem [shape: f32[32,256], index: 1, kind: input, shape index: {}]
  %s2 = inlined_call_operand.vmem [shape: f32[1,256], index: 2, kind: input, shape index: {}]
  %s3 = inlined_call_operand.hbm [shape: f32[256,128], index: 3, kind: input, shape index: {}]
  %s4 = inlined_call_operand.vmem [shape: f32[1,128], index: 4, kind: input, shape index: {}]
  %s5 = inlined_call_operand.vmem [shape: f32[128,64], index: 5, kind: input, shape index: {}]
  %s6 = inlined_call_operand.vmem [shape: f32[1,64], index: 6, kind: input, shape index: {}]
  %s7 = inlined_call_operand.vmem [shape: f32[64,128], index: 7, kind: input, shape index: {}]
  %s8 = inlined_call_operand.vmem [shape: f32[1,128], index: 8, kind: input, shape index: {}]
  %s9 = inlined_call_operand.vmem [shape: f32[8,1], index: 9, kind: output, shape index: {}]
  %s10 = sld [smem:[#allocation0]]
  $region50: #{tpu_custom_call.1} parent=0
    _
  %s12 = ssub.s32 1, %s10
  %s13 = scalar_select 0, %s12, %s10
  $region1: #{tpu_custom_call.1} parent=0
    #allocation2 [shape = 'u8[131072]{0}', space=vmem, size = 0x20000, scoped, tag = 'input window, operand 3, single buffered']
    #allocation3 [shape = 's32[1]{0}', space=sflag, size = 0x4, scoped, tag = 'scoped memory for tpu_custom_call.1']
    %14 = vsyncpa [#allocation3], 0
    // Predicated region
    $region2: #{tpu_custom_call.1} parent=1 // pred_check
      _
    $region3: #{tpu_custom_call.1} parent=1 // pred_check_branch
      %16 = sbr.rel (0) target = $region5
    $region4: #{tpu_custom_call.1} parent=1 // pred_region
      _
    $region5: #{tpu_custom_call.1} parent=1 // pred_fallthru
      _
    // Predicated region
    $region6: #{tpu_custom_call.1} parent=1 // pred_check
      _
    $region7: #{tpu_custom_call.1} parent=1 // pred_check_branch
      %18 = sbr.rel (0) target = $region9
    $region8: #{tpu_custom_call.1} parent=1 // pred_region
      _
    $region9: #{tpu_custom_call.1} parent=1 // pred_fallthru
      _
    // Predicated region
    $region10: #{tpu_custom_call.1} parent=1 // pred_check
      _
    $region11: #{tpu_custom_call.1} parent=1 // pred_check_branch
      %20 = sbr.rel (0) target = $region13
    $region12: #{tpu_custom_call.1} parent=1 // pred_region
      _
    $region13: #{tpu_custom_call.1} parent=1 // pred_fallthru
      _
    // Predicated region
    $region14: #{tpu_custom_call.1} parent=1 // pred_check
      _
    $region15: #{tpu_custom_call.1} parent=1 // pred_check_branch
      %22 = sbr.rel (0) target = $region17
    $region16: #{tpu_custom_call.1} parent=1 // pred_region
      %s24 = ssub.s32 4096, 4096
      %25 = vsyncadd [#allocation3], %s24
      %s26 = sshll.u32 [#allocation2], 4
      %s27 = int_to_ptr.vmem [resolvable:$true] %s26
      %32 = dma.hbm_to_vmem [thread:$0]  %s3, 4096, %s27, [#allocation3], 128, 128, 8
    $region17: #{tpu_custom_call.1} parent=1 // pred_fallthru
      _
    // Predicated region
    $region18: #{tpu_custom_call.1} parent=1 // pred_check
      _
    $region19: #{tpu_custom_call.1} parent=1 // pred_check_branch
      %34 = sbr.rel (0) target = $region21
    $region20: #{tpu_custom_call.1} parent=1 // pred_region
      _
    $region21: #{tpu_custom_call.1} parent=1 // pred_fallthru
      _
    // Predicated region
    $region22: #{tpu_custom_call.1} parent=1 // pred_check
      _
    $region23: #{tpu_custom_call.1} parent=1 // pred_check_branch
      %36 = sbr.rel (0) target = $region25
    $region24: #{tpu_custom_call.1} parent=1 // pred_region
      _
    $region25: #{tpu_custom_call.1} parent=1 // pred_fallthru
      _
    // Predicated region
    $region26: #{tpu_custom_call.1} parent=1 // pred_check
      _
    $region27: #{tpu_custom_call.1} parent=1 // pred_check_branch
      %38 = sbr.rel (0) target = $region29
    $region28: #{tpu_custom_call.1} parent=1 // pred_region
      _
    $region29: #{tpu_custom_call.1} parent=1 // pred_fallthru
      _
    // Predicated region
    $region30: #{tpu_custom_call.1} parent=1 // pred_check
      _
    $region31: #{tpu_custom_call.1} parent=1 // pred_check_branch
      %40 = sbr.rel (0) target = $region33
    $region32: #{tpu_custom_call.1} parent=1 // pred_region
      _
    $region33: #{tpu_custom_call.1} parent=1 // pred_fallthru
      _
    // Predicated region
    $region34: #{tpu_custom_call.1} parent=1 // pred_check
      _
    $region35: #{tpu_custom_call.1} parent=1 // pred_check_branch
      %42 = sbr.rel (0) target = $region37
    $region36: #{tpu_custom_call.1} parent=1 // pred_region
      _
    $region37: #{tpu_custom_call.1} parent=1 // pred_fallthru
      _
    // Predicated region
    $region38: #{tpu_custom_call.1} parent=1 // pred_check
      _
    $region39: #{tpu_custom_call.1} parent=1 // pred_check_branch
      %44 = sbr.rel (0) target = $region41
    $region40: #{tpu_custom_call.1} parent=1 // pred_region
      %45 = dma.done [#allocation3], 4096
    $region41: #{tpu_custom_call.1} parent=1 // pred_fallthru
      _
    %v46 = vld [vmem:[%s0] sm:$0xff]
    %v47 = vld [vmem:[%s1] sm:$0xff]
    %v48 = vld [vmem:[%s1 + $0x8] sm:$0xff]
    %v49 = vld [vmem:[%s1 + $0x10] sm:$0xff]
    %v50 = vld [vmem:[%s1 + $0x18] sm:$0xff]
    %v51 = vld [vmem:[%s1 + $0x20] sm:$0xff]
    %v52 = vld [vmem:[%s1 + $0x28] sm:$0xff]
    %v53 = vld [vmem:[%s1 + $0x30] sm:$0xff]
    %v54 = vld [vmem:[%s1 + $0x38] sm:$0xff]
    %v55 = vld [vmem:[%s2] sm:$0x3]
    %v57 = vlaneseq
    %v58 = vshrl.u32 %v57, 7
    %v59 = vsub.s32 0, %v58
    %v60 = vrot.slane %v55, %v59
    %v61 = vlaneseq
    %v62 = vshrl.u32 %v61, 7
    %v63 = vsub.s32 1, %v62
    %v64 = vrot.slane %v55, %v63
    %vm67 = vcmask 261120
    %v69 = vsel %vm67, %v46, 0
    %71 = vmatprep.subr.mxu0 %v48
    %72 = vmatpush1.msra.mxu0 %v47
    %73 = vmatprep.subr.mxu0 %v50
    %74 = vmatpush1.msra.mxu0 %v49
    %75 = vmatprep.subr.mxu0 %v52
    %76 = vmatpush1.msra.mxu0 %v51
    %77 = vmatprep.subr.mxu0 %v54
    %78 = vmatpush1.msra.mxu0 %v53
    %79 = vmatprep.subr.mxu0 0.0
    %80 = vmatpush1.msra.mxu0 0.0
    %81 = vmatprep.subr.mxu0 0.0
    %82 = vmatpush1.msra.mxu0 0.0
    %83 = vmatprep.subr.mxu0 0.0
    %84 = vmatpush1.msra.mxu0 0.0
    %85 = vmatprep.subr.mxu0 0.0
    %86 = vmatpush1.msra.mxu0 0.0
    %87 = vmatprep.subr.mxu0 0.0
    %88 = vmatpush1.msra.mxu0 0.0
    %89 = vmatprep.subr.mxu0 0.0
    %90 = vmatpush1.msra.mxu0 0.0
    %91 = vmatprep.subr.mxu0 0.0
    %92 = vmatpush1.msra.mxu0 0.0
    %93 = vmatprep.subr.mxu0 0.0
    %94 = vmatpush1.msra.mxu0 0.0
    %95 = vmatprep.subr.mxu0 0.0
    %96 = vmatpush1.msra.mxu0 0.0
    %97 = vmatprep.subr.mxu0 0.0
    %98 = vmatpush1.msra.mxu0 0.0
    %99 = vmatprep.subr.mxu0 0.0
    %100 = vmatpush1.msra.mxu0 0.0
    %101 = vmatprep.subr.mxu0 0.0
    %102 = vmatpush1.msra.mxu0 0.0
    %103 = vmatprep.subr.mxu0 0.0
    %104 = vmatpush1.msra.mxu0 0.0
    %105 = vmatprep.subr.mxu0 0.0
    %106 = vmatpush1.msra.mxu0 0.0
    %107 = vmatprep.subr.mxu0 0.0
    %108 = vmatpush1.msra.mxu0 0.0
    %109 = vmatprep.subr.mxu0 0.0
    %110 = vmatpush1.msra.mxu0 0.0
    %111 = vmatprep.subr.mxu0 0.0
    %112 = vmatpush1.msra.mxu0 0.0
    %113 = vmatprep.subr.mxu0 0.0
    %114 = vmatpush1.msra.mxu0 0.0
    %115 = vmatprep.subr.mxu0 0.0
    %116 = vmatpush1.msra.mxu0 0.0
    %117 = vmatprep.subr.mxu0 0.0
    %118 = vmatpush1.msra.mxu0 0.0
    %119 = vmatprep.subr.mxu0 0.0
    %120 = vmatpush1.msra.mxu0 0.0
    %121 = vmatprep.subr.mxu0 0.0
    %122 = vmatpush1.msra.mxu0 0.0
    %123 = vmatprep.subr.mxu0 0.0
    %124 = vmatpush1.msra.mxu0 0.0
    %125 = vmatprep.subr.mxu0 0.0
    %126 = vmatpush1.msra.mxu0 0.0
    %127 = vmatprep.subr.mxu0 0.0
    %128 = vmatpush1.msra.mxu0 0.0
    %129 = vmatprep.subr.mxu0 0.0
    %130 = vmatpush1.msra.mxu0 0.0
    %131 = vmatprep.subr.mxu0 0.0
    %132 = vmatpush1.msra.mxu0 0.0
    %133 = vmatprep.subr.mxu0 0.0
    %134 = vmatpush1.msra.mxu0 0.0
    %135 = vmatprep.mubr.f32.mxu0 0.0
    %136 = vmatmul.mubr.f32.gmra.mrb[0].mxu0 %v69
    %v137 = vpop.f32.mrb[0].mxu0
    %v138 = vadd.f32 %v60, %v137
    %v139 = vpop.f32.mrb[0].mxu0
    %v140 = vadd.f32 %v64, %v139
    %141 = vdwg.mxu0
    %v142 = vmax.f32 %v138, 0.0
    %v143 = vmax.f32 %v140, 0.0
    %v144 = vld [vmem:[#allocation2] sm:$0xff]
    %v145 = vld [vmem:[#allocation2 + $0x8] sm:$0xff]
    %v146 = vld [vmem:[#allocation2 + $0x10] sm:$0xff]
    %v147 = vld [vmem:[#allocation2 + $0x18] sm:$0xff]
    %v148 = vld [vmem:[#allocation2 + $0x20] sm:$0xff]
    %v149 = vld [vmem:[#allocation2 + $0x28] sm:$0xff]
    %v150 = vld [vmem:[#allocation2 + $0x30] sm:$0xff]
    %v151 = vld [vmem:[#allocation2 + $0x38] sm:$0xff]
    %v152 = vld [vmem:[#allocation2 + $0x40] sm:$0xff]
    %v153 = vld [vmem:[#allocation2 + $0x48] sm:$0xff]
    %v154 = vld [vmem:[#allocation2 + $0x50] sm:$0xff]
    %v155 = vld [vmem:[#allocation2 + $0x58] sm:$0xff]
    %v156 = vld [vmem:[#allocation2 + $0x60] sm:$0xff]
    %v157 = vld [vmem:[#allocation2 + $0x68] sm:$0xff]
    %v158 = vld [vmem:[#allocation2 + $0x70] sm:$0xff]
    %v159 = vld [vmem:[#allocation2 + $0x78] sm:$0xff]
    %v160 = vld [vmem:[#allocation2 + $0x80] sm:$0xff]
    %v161 = vld [vmem:[#allocation2 + $0x88] sm:$0xff]
    %v162 = vld [vmem:[#allocation2 + $0x90] sm:$0xff]
    %v163 = vld [vmem:[#allocation2 + $0x98] sm:$0xff]
    %v164 = vld [vmem:[#allocation2 + $0xa0] sm:$0xff]
    %v165 = vld [vmem:[#allocation2 + $0xa8] sm:$0xff]
    %v166 = vld [vmem:[#allocation2 + $0xb0] sm:$0xff]
    %v167 = vld [vmem:[#allocation2 + $0xb8] sm:$0xff]
    %v168 = vld [vmem:[#allocation2 + $0xc0] sm:$0xff]
    %v169 = vld [vmem:[#allocation2 + $0xc8] sm:$0xff]
    %v170 = vld [vmem:[#allocation2 + $0xd0] sm:$0xff]
    %v171 = vld [vmem:[#allocation2 + $0xd8] sm:$0xff]
    %v172 = vld [vmem:[#allocation2 + $0xe0] sm:$0xff]
    %v173 = vld [vmem:[#allocation2 + $0xe8] sm:$0xff]
    %v174 = vld [vmem:[#allocation2 + $0xf0] sm:$0xff]
    %v175 = vld [vmem:[#allocation2 + $0xf8] sm:$0xff]
    %v176 = vld [vmem:[%s4] sm:$0x1]
    %v178 = vlaneseq
    %v179 = vshrl.u32 %v178, 7
    %v180 = vsub.s32 0, %v179
    %v181 = vrot.slane %v176, %v180
    %183 = vmatprep.subr.mxu0 0.0
    %184 = vmatpush1.msra.mxu0 %v144
    %185 = vmatprep.subr.mxu0 0.0
    %186 = vmatpush1.msra.mxu0 %v145
    %187 = vmatprep.subr.mxu0 0.0
    %188 = vmatpush1.msra.mxu0 %v146
    %189 = vmatprep.subr.mxu0 0.0
    %190 = vmatpush1.msra.mxu0 %v147
    %191 = vmatprep.subr.mxu0 0.0
    %192 = vmatpush1.msra.mxu0 %v148
    %193 = vmatprep.subr.mxu0 0.0
    %194 = vmatpush1.msra.mxu0 %v149
    %195 = vmatprep.subr.mxu0 0.0
    %196 = vmatpush1.msra.mxu0 %v150
    %197 = vmatprep.subr.mxu0 0.0
    %198 = vmatpush1.msra.mxu0 %v151
    %199 = vmatprep.subr.mxu0 0.0
    %200 = vmatpush1.msra.mxu0 %v152
    %201 = vmatprep.subr.mxu0 0.0
    %202 = vmatpush1.msra.mxu0 %v153
    %203 = vmatprep.subr.mxu0 0.0
    %204 = vmatpush1.msra.mxu0 %v154
    %205 = vmatprep.subr.mxu0 0.0
    %206 = vmatpush1.msra.mxu0 %v155
    %207 = vmatprep.subr.mxu0 0.0
    %208 = vmatpush1.msra.mxu0 %v156
    %209 = vmatprep.subr.mxu0 0.0
    %210 = vmatpush1.msra.mxu0 %v157
    %211 = vmatprep.subr.mxu0 0.0
    %212 = vmatpush1.msra.mxu0 %v158
    %213 = vmatprep.subr.mxu0 0.0
    %214 = vmatpush1.msra.mxu0 %v159
    %215 = vmatprep.subr.mxu0 0.0
    %216 = vmatpush1.msra.mxu0 %v160
    %217 = vmatprep.subr.mxu0 0.0
    %218 = vmatpush1.msra.mxu0 %v161
    %219 = vmatprep.subr.mxu0 0.0
    %220 = vmatpush1.msra.mxu0 %v162
    %221 = vmatprep.subr.mxu0 0.0
    %222 = vmatpush1.msra.mxu0 %v163
    %223 = vmatprep.subr.mxu0 0.0
    %224 = vmatpush1.msra.mxu0 %v164
    %225 = vmatprep.subr.mxu0 0.0
    %226 = vmatpush1.msra.mxu0 %v165
    %227 = vmatprep.subr.mxu0 0.0
    %228 = vmatpush1.msra.mxu0 %v166
    %229 = vmatprep.subr.mxu0 0.0
    %230 = vmatpush1.msra.mxu0 %v167
    %231 = vmatprep.subr.mxu0 0.0
    %232 = vmatpush1.msra.mxu0 %v168
    %233 = vmatprep.subr.mxu0 0.0
    %234 = vmatpush1.msra.mxu0 %v169
    %235 = vmatprep.subr.mxu0 0.0
    %236 = vmatpush1.msra.mxu0 %v170
    %237 = vmatprep.subr.mxu0 0.0
    %238 = vmatpush1.msra.mxu0 %v171
    %239 = vmatprep.subr.mxu0 0.0
    %240 = vmatpush1.msra.mxu0 %v172
    %241 = vmatprep.subr.mxu0 0.0
    %242 = vmatpush1.msra.mxu0 %v173
    %243 = vmatprep.subr.mxu0 0.0
    %244 = vmatpush1.msra.mxu0 %v174
    %245 = vmatprep.subr.mxu0 0.0
    %246 = vmatpush1.msra.mxu0 %v175
    %247 = vmatprep.mubr.f32.mxu0 %v143
    %248 = vmatmul.mubr.f32.gmra.mrb[0].mxu0 %v142
    %v249 = vpop.f32.mrb[0].mxu0
    %v250 = vadd.f32 %v181, %v249
    %v251 = vpop.f32.mrb[0].mxu0
    %252 = vdwg.mxu0
    %v253 = vmax.f32 %v250, 0.0
    %v254 = vld [vmem:[%s5] sm:$0xff]
    %v255 = vld [vmem:[%s5 + $0x8] sm:$0xff]
    %v256 = vld [vmem:[%s5 + $0x10] sm:$0xff]
    %v257 = vld [vmem:[%s5 + $0x18] sm:$0xff]
    %v258 = vld [vmem:[%s5 + $0x20] sm:$0xff]
    %v259 = vld [vmem:[%s5 + $0x28] sm:$0xff]
    %v260 = vld [vmem:[%s5 + $0x30] sm:$0xff]
    %v261 = vld [vmem:[%s5 + $0x38] sm:$0xff]
    %v262 = vld [vmem:[%s5 + $0x40] sm:$0xff]
    %v263 = vld [vmem:[%s5 + $0x48] sm:$0xff]
    %v264 = vld [vmem:[%s5 + $0x50] sm:$0xff]
    %v265 = vld [vmem:[%s5 + $0x58] sm:$0xff]
    %v266 = vld [vmem:[%s5 + $0x60] sm:$0xff]
    %v267 = vld [vmem:[%s5 + $0x68] sm:$0xff]
    %v268 = vld [vmem:[%s5 + $0x70] sm:$0xff]
    %v269 = vld [vmem:[%s5 + $0x78] sm:$0xff]
    %v270 = vld [vmem:[%s6] sm:$0x1]
    %v272 = vlaneseq
    %v273 = vshrl.u32 %v272, 7
    %v274 = vsub.s32 0, %v273
    %v275 = vrot.slane %v270, %v274
    %277 = vmatprep.subr.mxu0 0.0
    %278 = vmatpush1.msra.mxu0 %v254
    %279 = vmatprep.subr.mxu0 0.0
    %280 = vmatpush1.msra.mxu0 %v255
    %281 = vmatprep.subr.mxu0 0.0
    %282 = vmatpush1.msra.mxu0 %v256
    %283 = vmatprep.subr.mxu0 0.0
    %284 = vmatpush1.msra.mxu0 %v257
    %285 = vmatprep.subr.mxu0 0.0
    %286 = vmatpush1.msra.mxu0 %v258
    %287 = vmatprep.subr.mxu0 0.0
    %288 = vmatpush1.msra.mxu0 %v259
    %289 = vmatprep.subr.mxu0 0.0
    %290 = vmatpush1.msra.mxu0 %v260
    %291 = vmatprep.subr.mxu0 0.0
    %292 = vmatpush1.msra.mxu0 %v261
    %293 = vmatprep.subr.mxu0 0.0
    %294 = vmatpush1.msra.mxu0 %v262
    %295 = vmatprep.subr.mxu0 0.0
    %296 = vmatpush1.msra.mxu0 %v263
    %297 = vmatprep.subr.mxu0 0.0
    %298 = vmatpush1.msra.mxu0 %v264
    %299 = vmatprep.subr.mxu0 0.0
    %300 = vmatpush1.msra.mxu0 %v265
    %301 = vmatprep.subr.mxu0 0.0
    %302 = vmatpush1.msra.mxu0 %v266
    %303 = vmatprep.subr.mxu0 0.0
    %304 = vmatpush1.msra.mxu0 %v267
    %305 = vmatprep.subr.mxu0 0.0
    %306 = vmatpush1.msra.mxu0 %v268
    %307 = vmatprep.subr.mxu0 0.0
    %308 = vmatpush1.msra.mxu0 %v269
    %309 = vmatprep.subr.mxu0 0.0
    %310 = vmatpush1.msra.mxu0 0.0
    %311 = vmatprep.subr.mxu0 0.0
    %312 = vmatpush1.msra.mxu0 0.0
    %313 = vmatprep.subr.mxu0 0.0
    %314 = vmatpush1.msra.mxu0 0.0
    %315 = vmatprep.subr.mxu0 0.0
    %316 = vmatpush1.msra.mxu0 0.0
    %317 = vmatprep.subr.mxu0 0.0
    %318 = vmatpush1.msra.mxu0 0.0
    %319 = vmatprep.subr.mxu0 0.0
    %320 = vmatpush1.msra.mxu0 0.0
    %321 = vmatprep.subr.mxu0 0.0
    %322 = vmatpush1.msra.mxu0 0.0
    %323 = vmatprep.subr.mxu0 0.0
    %324 = vmatpush1.msra.mxu0 0.0
    %325 = vmatprep.subr.mxu0 0.0
    %326 = vmatpush1.msra.mxu0 0.0
    %327 = vmatprep.subr.mxu0 0.0
    %328 = vmatpush1.msra.mxu0 0.0
    %329 = vmatprep.subr.mxu0 0.0
    %330 = vmatpush1.msra.mxu0 0.0
    %331 = vmatprep.subr.mxu0 0.0
    %332 = vmatpush1.msra.mxu0 0.0
    %333 = vmatprep.subr.mxu0 0.0
    %334 = vmatpush1.msra.mxu0 0.0
    %335 = vmatprep.subr.mxu0 0.0
    %336 = vmatpush1.msra.mxu0 0.0
    %337 = vmatprep.subr.mxu0 0.0
    %338 = vmatpush1.msra.mxu0 0.0
    %339 = vmatprep.subr.mxu0 0.0
    %340 = vmatpush1.msra.mxu0 0.0
    %341 = vmatprep.mubr.f32.mxu0 0.0
    %342 = vmatmul.mubr.f32.gmra.mrb[0].mxu0 %v253
    %v343 = vpop.f32.mrb[0].mxu0
    %v344 = vadd.f32 %v275, %v343
    %v345 = vpop.f32.mrb[0].mxu0
    %346 = vdwg.mxu0
    %v347 = vmax.f32 %v344, 0.0
    %v348 = vld [vmem:[%s7] sm:$0xff]
    %v349 = vld [vmem:[%s7 + $0x8] sm:$0xff]
    %v350 = vld [vmem:[%s7 + $0x10] sm:$0xff]
    %v351 = vld [vmem:[%s7 + $0x18] sm:$0xff]
    %v352 = vld [vmem:[%s7 + $0x20] sm:$0xff]
    %v353 = vld [vmem:[%s7 + $0x28] sm:$0xff]
    %v354 = vld [vmem:[%s7 + $0x30] sm:$0xff]
    %v355 = vld [vmem:[%s7 + $0x38] sm:$0xff]
    %vm356 = vcmask 523264
    %v358 = vsel %vm356, %v347, 0
    %360 = vmatprep.subr.mxu0 0.0
    %361 = vmatpush1.msra.mxu0 %v348
    %362 = vmatprep.subr.mxu0 0.0
    %363 = vmatpush1.msra.mxu0 %v349
    %364 = vmatprep.subr.mxu0 0.0
    %365 = vmatpush1.msra.mxu0 %v350
    %366 = vmatprep.subr.mxu0 0.0
    %367 = vmatpush1.msra.mxu0 %v351
    %368 = vmatprep.subr.mxu0 0.0
    %369 = vmatpush1.msra.mxu0 %v352
    %370 = vmatprep.subr.mxu0 0.0
    %371 = vmatpush1.msra.mxu0 %v353
    %372 = vmatprep.subr.mxu0 0.0
    %373 = vmatpush1.msra.mxu0 %v354
    %374 = vmatprep.subr.mxu0 0.0
    %375 = vmatpush1.msra.mxu0 %v355
    %376 = vmatprep.subr.mxu0 0.0
    %377 = vmatpush1.msra.mxu0 0.0
    %378 = vmatprep.subr.mxu0 0.0
    %379 = vmatpush1.msra.mxu0 0.0
    %380 = vmatprep.subr.mxu0 0.0
    %381 = vmatpush1.msra.mxu0 0.0
    %382 = vmatprep.subr.mxu0 0.0
    %383 = vmatpush1.msra.mxu0 0.0
    %384 = vmatprep.subr.mxu0 0.0
    %385 = vmatpush1.msra.mxu0 0.0
    %386 = vmatprep.subr.mxu0 0.0
    %387 = vmatpush1.msra.mxu0 0.0
    %388 = vmatprep.subr.mxu0 0.0
    %389 = vmatpush1.msra.mxu0 0.0
    %390 = vmatprep.subr.mxu0 0.0
    %391 = vmatpush1.msra.mxu0 0.0
    %392 = vmatprep.subr.mxu0 0.0
    %393 = vmatpush1.msra.mxu0 0.0
    %394 = vmatprep.subr.mxu0 0.0
    %395 = vmatpush1.msra.mxu0 0.0
    %396 = vmatprep.subr.mxu0 0.0
    %397 = vmatpush1.msra.mxu0 0.0
    %398 = vmatprep.subr.mxu0 0.0
    %399 = vmatpush1.msra.mxu0 0.0
    %400 = vmatprep.subr.mxu0 0.0
    %401 = vmatpush1.msra.mxu0 0.0
    %402 = vmatprep.subr.mxu0 0.0
    %403 = vmatpush1.msra.mxu0 0.0
    %404 = vmatprep.subr.mxu0 0.0
    %405 = vmatpush1.msra.mxu0 0.0
    %406 = vmatprep.subr.mxu0 0.0
    %407 = vmatpush1.msra.mxu0 0.0
    %408 = vmatprep.subr.mxu0 0.0
    %409 = vmatpush1.msra.mxu0 0.0
    %410 = vmatprep.subr.mxu0 0.0
    %411 = vmatpush1.msra.mxu0 0.0
    %412 = vmatprep.subr.mxu0 0.0
    %413 = vmatpush1.msra.mxu0 0.0
    %414 = vmatprep.subr.mxu0 0.0
    %415 = vmatpush1.msra.mxu0 0.0
    %416 = vmatprep.subr.mxu0 0.0
    %417 = vmatpush1.msra.mxu0 0.0
    %418 = vmatprep.subr.mxu0 0.0
    %419 = vmatpush1.msra.mxu0 0.0
    %420 = vmatprep.subr.mxu0 0.0
    %421 = vmatpush1.msra.mxu0 0.0
    %422 = vmatprep.subr.mxu0 0.0
    %423 = vmatpush1.msra.mxu0 0.0
    %424 = vmatprep.mubr.f32.mxu0 0.0
    %425 = vmatmul.mubr.f32.gmra.mrb[0].mxu0 %v358
    %v426 = vpop.f32.mrb[0].mxu0
    %v427 = vadd.f32 0.0, %v426
    %v428 = vpop.f32.mrb[0].mxu0
    %429 = vdwg.mxu0
    %v430 = vld [vmem:[%s8] sm:$0x1]
    %v432 = vlaneseq
    %v433 = vshrl.u32 %v432, 7
    %v434 = vsub.s32 0, %v433
    %v435 = vrot.slane %v430, %v434
    %v437 = vadd.f32 %v427, %v435
    %v438 = vand.u32 2147483647, %v437
    %v439 = vsub.f32 0.0, %v438
    %v440 = vmul.f32 %v439, 1.442695
    %v441 = vpow.pop %v440
    %v442 = vadd.f32 %v441, 1.0
    %v443 = vrcp.pop %v442
    %v444 = vmul.f32 %v442, %v443
    %v445 = vsub.f32 2.0, %v444
    %v446 = vmul.f32 %v443, %v445
    %vm447 = vcmp.ge.f32.partialorder %v437, 0.0
    %v448 = vmul.f32 %v441, %v446
    %v449 = vsel %vm447, %v446, %v448
    %vm450 = vcmask 7168
    %451 = vst.msk [vmem:[%s9] sm:$0xff] %vm450, %v449
    // Predicated region
    $region42: #{tpu_custom_call.1} parent=1 // pred_check
      _
    $region43: #{tpu_custom_call.1} parent=1 // pred_check_branch
      %453 = sbr.rel (0) target = $region45
    $region44: #{tpu_custom_call.1} parent=1 // pred_region
      _
    $region45: #{tpu_custom_call.1} parent=1 // pred_fallthru
      _
    // Predicated region
    $region46: #{tpu_custom_call.1} parent=1 // pred_check
      _
    $region47: #{tpu_custom_call.1} parent=1 // pred_check_branch
      %455 = sbr.rel (0) target = $region49
    $region48: #{tpu_custom_call.1} parent=1 // pred_region
      _
    $region49: #{tpu_custom_call.1} parent=1 // pred_fallthru
      _
    %456 = vsyncpa [#allocation3], 1

</llo_original>
